<compile_context>
chip_gen: v5e
topology: v5e:2x2
jax: 0.10.0
libtpu: 0.0.40
codegen_flags: <defaults>
</compile_context>

<pallas_src>
import jax
import jax.numpy as jnp
from jax.experimental import pallas as pl
from jax.experimental.pallas import tpu as pltpu


def se_kernel(x_ref, w1a_ref, w2a_ref, o_ref):
    # x_ref block: (Nb, C, HW) in the input dtype.
    x = x_ref[...]
    nb = x.shape[0]

    # adaptive_avg_pool2d(x, (1,1)) == mean over spatial dims (lane reduce),
    # accumulated in f32; only the (Nb, C, 1) result is f32, not the slab.
    pooled = jnp.mean(x.astype(jnp.float32), axis=-1, keepdims=True)  # (Nb,C,1)

    # fc1 (1x1 conv C -> sc) with b1 folded in: augment pooled with a ones
    # sublane row and contract over C+1 against w1a = [w1^T; b1].
    ones_row = jnp.ones((nb, 1, 1), jnp.float32)
    pooled_aug = jnp.concatenate([pooled, ones_row], axis=1)          # (Nb,C+1,1)
    w1a = w1a_ref[...]                                                # (C+1, sc)
    s = jnp.sum(pooled_aug * w1a[None, :, :], axis=1, keepdims=True)  # (Nb,1,sc)
    # SiLU
    s = s * jax.nn.sigmoid(s)

    # fc2 (1x1 conv sc -> C) with b2 folded in: augment s with a ones lane
    # and contract over sc+1 against w2a = [w2 | b2].
    ones_lane = jnp.ones((nb, 1, 1), jnp.float32)
    s_aug = jnp.concatenate([s, ones_lane], axis=-1)                  # (Nb,1,sc+1)
    w2a = w2a_ref[...]                                                # (C, sc+1)
    g = jnp.sum(w2a[None, :, :] * s_aug, axis=-1, keepdims=True)      # (Nb,C,1)

    # Sigmoid gate; multiply in the input dtype (lane broadcast over HW).
    gate = jax.nn.sigmoid(g).astype(x.dtype)                          # (Nb,C,1)
    o_ref[...] = (x * gate).astype(o_ref.dtype)


def squeeze_excitation(x, w1, b1, w2, b2):
    """x: (N, C, H, W); w1: (sc, C); b1: (sc,); w2: (C, sc); b2: (C,)."""
    N, C, H, W = x.shape
    HW = H * W
    sc = w1.shape[0]
    x2 = x.reshape(N, C, HW)

    # Generation-aware VMEM sizing (v7x has only 64 MiB physical per TC).
    try:
        vmem_cap = int(pltpu.get_tpu_info().vmem_capacity_bytes)
    except Exception:
        vmem_cap = 64 * 1024 * 1024  # conservative fallback
    block_budget = min(16 * 1024 * 1024, vmem_cap // 8)
    vmem_limit = min(vmem_cap * 3 // 4, 64 * 1024 * 1024)

    itemsize = x.dtype.itemsize
    per_sample = C * HW * itemsize
    # Live bytes per sample per step: input + output blocks double-buffered
    # (4x) plus ~1 block-sized in-kernel temp for the gated product.
    nb = max(1, block_budget // (5 * per_sample))
    # Keep >= 2 grid steps so v7x's two TensorCores both get work.
    nb = int(max(1, min(nb, min(N, pl.cdiv(N, 2)))))
    grid = (pl.cdiv(N, nb),)

    # Kernel-friendly weight layouts with folded biases.
    w1a = jnp.concatenate([w1.T, b1.reshape(1, sc)], axis=0)   # (C+1, sc)
    w2a = jnp.concatenate([w2, b2.reshape(C, 1)], axis=1)      # (C, sc+1)

    flops = int(2 * N * C * HW + 4 * N * C * sc)
    bytes_accessed = int(2 * N * C * HW * itemsize + (w1a.size + w2a.size) * 4)
    transcendentals = int(N * (C + 2 * sc))

    out = pl.pallas_call(
        se_kernel,
        out_shape=jax.ShapeDtypeStruct((N, C, HW), x.dtype),
        grid=grid,
        in_specs=[
            pl.BlockSpec((nb, C, HW), lambda i: (i, 0, 0)),     # batched slab
            pl.BlockSpec((C + 1, sc), lambda i: (0, 0)),        # [w1^T; b1]
            pl.BlockSpec((C, sc + 1), lambda i: (0, 0)),        # [w2 | b2]
        ],
        out_specs=pl.BlockSpec((nb, C, HW), lambda i: (i, 0, 0)),
        compiler_params=pltpu.CompilerParams(
            dimension_semantics=("parallel",),
            vmem_limit_bytes=int(vmem_limit),
        ),
        cost_estimate=pl.CostEstimate(
            flops=flops,
            transcendentals=transcendentals,
            bytes_accessed=bytes_accessed,
        ),
    )(x2, w1a, w2a)
    return out.reshape(N, C, H, W)


def reference_se(x, w1, b1, w2, b2):
    pooled = jnp.mean(x, axis=(2, 3), keepdims=True)                     # (N,C,1,1)
    s = jnp.einsum("sc,nchw->nshw", w1, pooled) + b1[None, :, None, None]
    s = s * jax.nn.sigmoid(s)
    s = jnp.einsum("cs,nshw->nchw", w2, s) + b2[None, :, None, None]
    return jax.nn.sigmoid(s) * x


if __name__ == "__main__":
    # Module config: input_c=4, expand_c=4, squeeze_factor=4 -> squeeze_c=1
    input_c, expand_c, squeeze_factor = 4, 4, 4
    squeeze_c = input_c // squeeze_factor
    N, H, W = 2, 16, 16

    key = jax.random.PRNGKey(0)
    kx, k1, k2, k3, k4 = jax.random.split(key, 5)

    x = jax.random.normal(kx, (N, expand_c, H, W), dtype=jnp.float32)
    # Conv2d(expand_c, squeeze_c, 1) weights (1x1 kernel dims squeezed away)
    w1 = jax.random.normal(k1, (squeeze_c, expand_c), dtype=jnp.float32) * 0.1
    b1 = jax.random.normal(k2, (squeeze_c,), dtype=jnp.float32) * 0.1
    # Conv2d(squeeze_c, expand_c, 1)
    w2 = jax.random.normal(k3, (expand_c, squeeze_c), dtype=jnp.float32) * 0.1
    b2 = jax.random.normal(k4, (expand_c,), dtype=jnp.float32) * 0.1

    out = squeeze_excitation(x, w1, b1, w2, b2)
    out = jax.block_until_ready(out)

    ref = reference_se(x, w1, b1, w2, b2)
    assert out.shape == x.shape and out.dtype == x.dtype
    assert jnp.allclose(out, ref, atol=1e-5, rtol=1e-5)

    print("KERNEL_OK")
</pallas_src>

<mosaic_0001>
module attributes {stable_mosaic.version = 11 : i64} {
  func.func @se_kernel(%arg0: i32, %arg1: memref<1x4x256xf32, #tpu.memory_space<vmem>>, %arg2: memref<5x1xf32, #tpu.memory_space<vmem>>, %arg3: memref<4x2xf32, #tpu.memory_space<vmem>>, %arg4: memref<1x4x256xf32, #tpu.memory_space<vmem>>) attributes {dimension_semantics = [#tpu.dimension_semantics<parallel>], iteration_bounds = array<i64: 2>, scalar_prefetch = 0 : i64, scratch_operands = 0 : i64, tpu.core_type = #tpu.core_type<tc>, window_params = [{transform_indices = @transform_0, window_bounds = array<i64: 1, 4, 256>}, {pipeline_mode = #tpu.pipeline_mode<synchronous>, transform_indices = @transform_1, window_bounds = array<i64: 5, 1>}, {pipeline_mode = #tpu.pipeline_mode<synchronous>, transform_indices = @transform_2, window_bounds = array<i64: 4, 2>}, {transform_indices = @transform_3, window_bounds = array<i64: 1, 4, 256>}]} {
    %c0 = arith.constant 0 : index
    %c0_0 = arith.constant 0 : index
    %c0_1 = arith.constant 0 : index
    %0 = vector.load %arg1[%c0, %c0_0, %c0_1] : memref<1x4x256xf32, #tpu.memory_space<vmem>>, vector<1x4x256xf32>
    %cst = arith.constant dense<0.000000e+00> : vector<1x4xf32>
    %1 = vector.multi_reduction <add>, %0, %cst [2] : vector<1x4x256xf32> to vector<1x4xf32>
    %2 = vector.shape_cast %1 : vector<1x4xf32> to vector<1x4x1xf32>
    %cst_2 = arith.constant 2.560000e+02 : f32
    %3 = vector.broadcast %cst_2 : f32 to vector<1x4x1xf32>
    %4 = arith.divf %2, %3 : vector<1x4x1xf32>
    %cst_3 = arith.constant 1.000000e+00 : f32
    %5 = vector.broadcast %cst_3 : f32 to vector<1x1x1xf32>
    %6 = tpu.concatenate %4, %5 in 1 : vector<1x4x1xf32>, vector<1x1x1xf32> -> vector<1x5x1xf32>
    %c0_4 = arith.constant 0 : index
    %c0_5 = arith.constant 0 : index
    %7 = vector.load %arg2[%c0_4, %c0_5] : memref<5x1xf32, #tpu.memory_space<vmem>>, vector<5x1xf32>
    %8 = vector.shape_cast %7 : vector<5x1xf32> to vector<1x5x1xf32>
    %9 = arith.mulf %6, %8 : vector<1x5x1xf32>
    %cst_6 = arith.constant dense<0.000000e+00> : vector<1x1xf32>
    %10 = vector.multi_reduction <add>, %9, %cst_6 [1] : vector<1x5x1xf32> to vector<1x1xf32>
    %11 = vector.shape_cast %10 : vector<1x1xf32> to vector<1x1x1xf32>
    %12 = arith.negf %11 : vector<1x1x1xf32>
    %13 = math.exp %12 : vector<1x1x1xf32>
    %cst_7 = arith.constant 1.000000e+00 : f32
    %14 = vector.broadcast %cst_7 : f32 to vector<1x1x1xf32>
    %15 = arith.addf %14, %13 : vector<1x1x1xf32>
    %16 = arith.divf %14, %15 : vector<1x1x1xf32>
    %17 = arith.mulf %11, %16 : vector<1x1x1xf32>
    %cst_8 = arith.constant 1.000000e+00 : f32
    %18 = vector.broadcast %cst_8 : f32 to vector<1x1x1xf32>
    %19 = tpu.concatenate %17, %18 in 2 : vector<1x1x1xf32>, vector<1x1x1xf32> -> vector<1x1x2xf32>
    %c0_9 = arith.constant 0 : index
    %c0_10 = arith.constant 0 : index
    %20 = vector.load %arg3[%c0_9, %c0_10] : memref<4x2xf32, #tpu.memory_space<vmem>>, vector<4x2xf32>
    %21 = vector.shape_cast %20 : vector<4x2xf32> to vector<1x4x2xf32>
    %22 = vector.broadcast %19 : vector<1x1x2xf32> to vector<1x4x2xf32>
    %23 = arith.mulf %21, %22 : vector<1x4x2xf32>
    %cst_11 = arith.constant dense<0.000000e+00> : vector<1x4xf32>
    %24 = vector.multi_reduction <add>, %23, %cst_11 [2] : vector<1x4x2xf32> to vector<1x4xf32>
    %25 = vector.shape_cast %24 : vector<1x4xf32> to vector<1x4x1xf32>
    %26 = arith.negf %25 : vector<1x4x1xf32>
    %27 = math.exp %26 : vector<1x4x1xf32>
    %cst_12 = arith.constant 1.000000e+00 : f32
    %28 = vector.broadcast %cst_12 : f32 to vector<1x4x1xf32>
    %29 = arith.addf %28, %27 : vector<1x4x1xf32>
    %30 = arith.divf %28, %29 : vector<1x4x1xf32>
    %31 = vector.broadcast %30 : vector<1x4x1xf32> to vector<1x4x256xf32>
    %32 = arith.mulf %0, %31 : vector<1x4x256xf32>
    %c0_13 = arith.constant 0 : index
    %c0_14 = arith.constant 0 : index
    %c0_15 = arith.constant 0 : index
    %33 = vector.load %arg4[%c0_13, %c0_14, %c0_15] : memref<1x4x256xf32, #tpu.memory_space<vmem>>, vector<1x4x256xf32>
    tpu.vector_store %arg4[%c0_13, %c0_14, %c0_15], %32 {strides = array<i32>} : memref<1x4x256xf32, #tpu.memory_space<vmem>>, vector<1x4x256xf32>,
    return
  }
  func.func @transform_0(%arg0: i32) -> (i32, i32, i32) {
    %c0_i32 = arith.constant 0 : i32
    %c0_i32_0 = arith.constant 0 : i32
    %c0_i32_1 = arith.constant 0 : i32
    return %arg0, %c0_i32, %c0_i32_0 : i32, i32, i32
  }
  func.func @transform_1(%arg0: i32) -> (i32, i32) {
    %c0_i32 = arith.constant 0 : i32
    %c0_i32_0 = arith.constant 0 : i32
    %c0_i32_1 = arith.constant 0 : i32
    return %c0_i32, %c0_i32_0 : i32, i32
  }
  func.func @transform_2(%arg0: i32) -> (i32, i32) {
    %c0_i32 = arith.constant 0 : i32
    %c0_i32_0 = arith.constant 0 : i32
    %c0_i32_1 = arith.constant 0 : i32
    return %c0_i32, %c0_i32_0 : i32, i32
  }
  func.func @transform_3(%arg0: i32) -> (i32, i32, i32) {
    %c0_i32 = arith.constant 0 : i32
    %c0_i32_0 = arith.constant 0 : i32
    %c0_i32_1 = arith.constant 0 : i32
    return %arg0, %c0_i32, %c0_i32_0 : i32, i32, i32
  }
}

</mosaic_0001>

<llo_original>
// kernel: tpu_custom_call.1
$region0: #{tpu_custom_call.1}
  #allocation0 [shape = 'u32[]', space=smem, size = 0x4, offset = 0x4, fixed_abs, tag = 'smem constant byte address 0x4 - core index']
  #allocation1 [shape = 'u32[72,128]{1,0:T(1,128)}', space=vmem, size = 0x9000, scoped, tag = 'internal scratch']
  %s0 = inlined_call_operand.hbm [shape: f32[2,4,256], index: 0, kind: input, shape index: {}]
  %s1 = inlined_call_operand.vmem [shape: f32[5,1], index: 1, kind: input, shape index: {}]
  %s2 = inlined_call_operand.vmem [shape: f32[4,2], index: 2, kind: input, shape index: {}]
  %s3 = inlined_call_operand.hbm [shape: f32[2,4,256], index: 3, kind: output, shape index: {}]
  %s4 = sld [smem:[#allocation0]]
  $region49: #{tpu_custom_call.1} parent=0
    _
  %s6 = ssub.s32 1, %s4
  %s7 = scalar_select 0, %s6, %s4
  $region1: #{tpu_custom_call.1} parent=0
    #allocation2 [shape = 'u8[8192]{0}', space=vmem, size = 0x2000, scoped, tag = 'input window, operand 0']
    #allocation3 [shape = 's32[2]{0}', space=sflag, size = 0x8, scoped, tag = 'scoped memory for tpu_custom_call.1']
    #allocation4 [shape = 's32[2]{0}', space=sflag, size = 0x8, scoped, tag = 'scoped memory for tpu_custom_call.1']
    #allocation5 [shape = 'u8[8192]{0}', space=vmem, size = 0x2000, scoped, tag = 'output window, operand 0']
    %8 = vsyncpa [#allocation3], 0
    %s9 = scalar_lea.sflag [#allocation3], 1
    %10 = vsyncpa %s9, 0
    %11 = vsyncpa [#allocation4], 0
    %s12 = scalar_lea.sflag [#allocation4], 1
    %13 = vsyncpa %s12, 0
    loop: start=0, step=1, limit=4
    $region2: #{tpu_custom_call.1} parent=1 // loop_pre_header
      _
    $region3: #{tpu_custom_call.1} parent=1 // loop_header
      %s15 = sphi 0, %s19
      %p16 = scmp.ge.s32.totalorder %s15, 4
      %s25 = sphi 0, %s27
      %s28 = sphi 0, %s25
      %s29 = sphi 0, %s28
      %s45 = sphi 0, %s29
      %s49 = sphi 0, %s49
      %s51 = sphi 0, %s49
      %s52 = sphi 0, %s51
      %s66 = sphi 0, %s52
      %s70 = sphi 0, %s70
      %s72 = sphi 0, %s70
      %s73 = sphi 0, %s72
      %s87 = sphi 0, %s73
      %s93 = sphi 0, %s95
      %s96 = sphi 0, %s93
      %s97 = sphi 0, %s96
      %s113 = sphi 0, %s97
    $region4: #{tpu_custom_call.1} parent=1 // loop_header_branch
      %18 = sbr.rel (%p16) target = $region8
    $region5: #{tpu_custom_call.1} parent=1 // loop_body
      %s20 = ssub.s32 %s15, 1
      %s21 = ssub.s32 %s15, 2
      %s22 = sadd.s32 %s15, 1
      %s23 = ssub.s32 %s15, %s22
      %p24 = scmp.eq.s32.totalorder %s23, 0
      %s26 = sadd.s32 %s25, 1
      %s27 = scalar_select %p24, %s25, %s26
      %p30 = pneg %p24
      %p31 = scmp.eq.s32.totalorder %s15, 1
      %p32 = por %p30, %p31
      %p33 = scmp.ne.s32.totalorder %s25, %s28
      %p34 = scmp.eq.s32.totalorder %s15, 0
      %p35 = por %p33, %p34
      %p36 = scmp.ne.s32.totalorder %s25, %s28
      %p37 = scmp.eq.s32.totalorder %s20, 1
      %p38 = por %p36, %p37
      %p39 = scmp.ne.s32.totalorder %s28, %s29
      %p40 = scmp.eq.s32.totalorder %s20, 0
      %p41 = por %p39, %p40
      %p42 = scmp.ne.s32.totalorder %s28, %s29
      %p43 = scmp.eq.s32.totalorder %s21, 1
      %p44 = por %p42, %p43
      %p46 = scmp.ne.s32.totalorder %s29, %s45
      %p47 = scmp.eq.s32.totalorder %s21, 0
      %p48 = por %p46, %p47
      %s50 = sadd.s32 %s49, 1
      %p53 = scmp.eq.s32.totalorder %s15, 1
      %p54 = scmp.ne.s32.totalorder %s49, %s51
      %p55 = scmp.eq.s32.totalorder %s15, 0
      %p56 = por %p54, %p55
      %p57 = scmp.ne.s32.totalorder %s49, %s51
      %p58 = scmp.eq.s32.totalorder %s20, 1
      %p59 = por %p57, %p58
      %p60 = scmp.ne.s32.totalorder %s51, %s52
      %p61 = scmp.eq.s32.totalorder %s20, 0
      %p62 = por %p60, %p61
      %p63 = scmp.ne.s32.totalorder %s51, %s52
      %p64 = scmp.eq.s32.totalorder %s21, 1
      %p65 = por %p63, %p64
      %p67 = scmp.ne.s32.totalorder %s52, %s66
      %p68 = scmp.eq.s32.totalorder %s21, 0
      %p69 = por %p67, %p68
      %s71 = sadd.s32 %s70, 1
      %p74 = scmp.eq.s32.totalorder %s15, 1
      %p75 = scmp.ne.s32.totalorder %s70, %s72
      %p76 = scmp.eq.s32.totalorder %s15, 0
      %p77 = por %p75, %p76
      %p78 = scmp.ne.s32.totalorder %s70, %s72
      %p79 = scmp.eq.s32.totalorder %s20, 1
      %p80 = por %p78, %p79
      %p81 = scmp.ne.s32.totalorder %s72, %s73
      %p82 = scmp.eq.s32.totalorder %s20, 0
      %p83 = por %p81, %p82
      %p84 = scmp.ne.s32.totalorder %s72, %s73
      %p85 = scmp.eq.s32.totalorder %s21, 1
      %p86 = por %p84, %p85
      %p88 = scmp.ne.s32.totalorder %s73, %s87
      %p89 = scmp.eq.s32.totalorder %s21, 0
      %p90 = por %p88, %p89
      %s91 = ssub.s32 %s15, %s22
      %p92 = scmp.eq.s32.totalorder %s91, 0
      %s94 = sadd.s32 %s93, 1
      %s95 = scalar_select %p92, %s93, %s94
      %p98 = pneg %p92
      %p99 = scmp.eq.s32.totalorder %s15, 1
      %p100 = por %p98, %p99
      %p101 = scmp.ne.s32.totalorder %s93, %s96
      %p102 = scmp.eq.s32.totalorder %s15, 0
      %p103 = por %p101, %p102
      %p104 = scmp.ne.s32.totalorder %s93, %s96
      %p105 = scmp.eq.s32.totalorder %s20, 1
      %p106 = por %p104, %p105
      %p107 = scmp.ne.s32.totalorder %s96, %s97
      %p108 = scmp.eq.s32.totalorder %s20, 0
      %p109 = por %p107, %p108
      %p110 = scmp.ne.s32.totalorder %s96, %s97
      %p111 = scmp.eq.s32.totalorder %s21, 1
      %p112 = por %p110, %p111
      %p114 = scmp.ne.s32.totalorder %s97, %s113
      %p115 = scmp.eq.s32.totalorder %s21, 0
      %p116 = por %p114, %p115
      %p117 = scmp.le.s32.totalorder 1, %s15
      %p118 = scmp.lt.s32.totalorder %s15, 3
      %p119 = pnand %p117, %p118
      %p120 = pneg %p119
      // Predicated region
      $region9: #{tpu_custom_call.1} parent=5 // pred_check
        _
      $region10: #{tpu_custom_call.1} parent=5 // pred_check_branch
        %122 = sbr.rel (%p119) target = $region12
      $region11: #{tpu_custom_call.1} parent=5 // pred_region
        %s123 = ssub.s32 %s15, 1
        // Predicated region
        $region13: #{tpu_custom_call.1} parent=11 // pred_check
          %p124 = pneg %p62
        $region14: #{tpu_custom_call.1} parent=11 // pred_check_branch
          %126 = sbr.rel (%p124) target = $region16
        $region15: #{tpu_custom_call.1} parent=11 // pred_region
          _
        $region16: #{tpu_custom_call.1} parent=11 // pred_fallthru
          _
        // Predicated region
        $region17: #{tpu_custom_call.1} parent=11 // pred_check
          %p127 = pneg %p83
        $region18: #{tpu_custom_call.1} parent=11 // pred_check_branch
          %129 = sbr.rel (%p127) target = $region20
        $region19: #{tpu_custom_call.1} parent=11 // pred_region
          _
        $region20: #{tpu_custom_call.1} parent=11 // pred_fallthru
          _
      $region12: #{tpu_custom_call.1} parent=5 // pred_fallthru
        _
      %p130 = scmp.lt.s32.totalorder %s15, 2
      // Predicated region
      $region21: #{tpu_custom_call.1} parent=5 // pred_check
        %p131 = pneg %p130
      $region22: #{tpu_custom_call.1} parent=5 // pred_check_branch
        %133 = sbr.rel (%p131) target = $region24
      $region23: #{tpu_custom_call.1} parent=5 // pred_region
        // Predicated region
        $region25: #{tpu_custom_call.1} parent=23 // pred_check
          %p134 = pneg %p35
        $region26: #{tpu_custom_call.1} parent=23 // pred_check_branch
          %136 = sbr.rel (%p134) target = $region28
        $region27: #{tpu_custom_call.1} parent=23 // pred_region
          %s137 = sand.u32 %s25, 1
          %s138 = scalar_lea.sflag [#allocation3], %s137
          %s139 = sand.u32 %s25, 1
          %s140 = smul.addr %s139, 8
          %s141 = scalar_lea.vmem [#allocation2], %s140
          %143 = vsyncadd %s138, 0
          %s144 = smul.addr %s15, 2
          %s145 = smul.addr %s144, 4
          %s146 = scalar_lea.hbm %s0, %s145
          %s148 = sshll.u32 %s146, 4
          %s149 = int_to_ptr.hbm [resolvable:$true] %s148
          %s150 = sshll.u32 %s141, 4
          %s151 = int_to_ptr.vmem [resolvable:$true] %s150
          %153 = dma.hbm_to_vmem [thread:$0]  %s149, 128, %s151, %s138
        $region28: #{tpu_custom_call.1} parent=23 // pred_fallthru
          _
      $region24: #{tpu_custom_call.1} parent=5 // pred_fallthru
        _
      %p154 = scmp.le.s32.totalorder 1, %s15
      %p155 = scmp.lt.s32.totalorder %s15, 3
      %p156 = pnand %p154, %p155
      %p157 = pneg %p156
      // Predicated region
      $region29: #{tpu_custom_call.1} parent=5 // pred_check
        _
      $region30: #{tpu_custom_call.1} parent=5 // pred_check_branch
        %159 = sbr.rel (%p156) target = $region32
      $region31: #{tpu_custom_call.1} parent=5 // pred_region
        %s160 = ssub.s32 %s15, 1
        %s161 = sand.u32 %s28, 1
        %s162 = scalar_lea.sflag [#allocation3], %s161
        %s163 = sand.u32 %s28, 1
        %s164 = smul.addr %s163, 8
        %s165 = scalar_lea.vmem [#allocation2], %s164
        // Predicated region
        $region33: #{tpu_custom_call.1} parent=31 // pred_check
          %p166 = pneg %p41
        $region34: #{tpu_custom_call.1} parent=31 // pred_check_branch
          %168 = sbr.rel (%p166) target = $region36
        $region35: #{tpu_custom_call.1} parent=31 // pred_region
          %170 = dma.done %s162, 128
        $region36: #{tpu_custom_call.1} parent=31 // pred_fallthru
          _
        %s171 = sand.u32 %s28, 1
        %s172 = scalar_lea.sflag [#allocation3], %s171
        %s173 = sand.u32 %s28, 1
        %s174 = smul.addr %s173, 8
        %s175 = scalar_lea.vmem [#allocation2], %s174
        %p176 = pneg %p41
        %p177 = pneg %p38
        %p178 = pneg %p62
        %p179 = pneg %p59
        %p180 = pneg %p83
        %p181 = pneg %p80
        %p182 = pneg %p109
        %p183 = pneg %p106
        %s184 = sand.u32 %s96, 1
        %s185 = scalar_lea.sflag [#allocation4], %s184
        %s186 = sand.u32 %s96, 1
        %s187 = smul.addr %s186, 8
        %s188 = scalar_lea.vmem [#allocation5], %s187
        %v189 = vld [vmem:[%s165] sm:$0xff]
        %191 = vst [vmem:[#allocation1] ss:$2 sm:$0xff] %v189
        %v192 = vld.sshfl [vmem:[#allocation1] sm:$0xff pattern:$0x75316420]
        %v193 = vld.sshfl [vmem:[#allocation1 + $0x8] sm:$0xff pattern:$0x75316420]
        %vm196 = vcmask 1043456
        %v197 = vsel %vm196, %v192, 0.0
        %v198 = vsel %vm196, %v193, 0.0
        %v199 = vadd.f32 %v197, %v198
        %200 = vadd.xlane.f32.xlu0 %v199
        %v201 = vpop.xlane.xlu0 %200
        %v202 = vrcp.pop 256.0
        %v203 = vmul.f32 256.0, %v202
        %v204 = vsub.f32 1.0, %v203
        %v205 = vmul.f32 %v202, %v204
        %v206 = vadd.f32 %v202, %v205
        %vm207 = vweird.f32 %v202
        %v208 = vsel %vm207, %v202, %v206
        %v209 = vmul.f32 %v201, %v208
        %v210 = vsel %vm196, %v209, 1.0
        %v211 = vld [vmem:[%s1] sm:$0x1f]
        %v212 = vmul.f32 %v210, %v211
        %vm213 = vcmask 4096
        %v214 = vsel %vm213, %v212, 0.0
        %v215 = vrot.slane %v214, 4
        %v216 = vadd.f32 %v214, %v215
        %v217 = vrot.slane %v216, 2
        %v218 = vadd.f32 %v216, %v217
        %v219 = vrot.slane %v218, 1
        %v220 = vadd.f32 %v218, %v219
        %v221 = vxor.u32 %v220, 2147483648
        %v222 = vmul.f32 %v221, 1.442695
        %v223 = vpow.pop %v222
        %v224 = vadd.f32 %v223, 1.0
        %v225 = vrcp.pop %v224
        %v226 = vmul.f32 %v224, %v225
        %v227 = vsub.f32 1.0, %v226
        %v228 = vmul.f32 %v225, %v227
        %v229 = vadd.f32 %v225, %v228
        %vm230 = vweird.f32 %v224
        %vm231 = vweird.f32 %v225
        %vm232 = vmor %vm230, %vm231
        %v233 = vsel %vm232, %v225, %v229
        %v234 = vand.u32 2147483647, %v224
        %vm235 = vcmp.eq.f32.partialorder %v234, 8.507059e+37
        %v236 = vand.u32 %v224, 2147483648
        %v237 = vor.u32 1.1754944e-38, %v236
        %v238 = vsel %vm235, %v237, %v233
        %v239 = vmul.f32 1.0, %v238
        %v240 = vmul.f32 %v220, %v239
        %vm241 = vcmask 7168
        %v242 = vsel %vm241, %v240, 1.0
        %v243 = vld [vmem:[%s2] sm:$0xf]
        %v244 = vperm.slane %v242, 0
        %v245 = vmul.f32 %v243, %v244
        %vm246 = vcmask 11264
        %v247 = vsel %vm246, %v245, 0.0
        %248 = vadd.xlane.f32.xlu0 %v247
        %v249 = vpop.xlane.xlu0 %248
        %v250 = vxor.u32 %v249, 2147483648
        %v251 = vmul.f32 %v250, 1.442695
        %v252 = vpow.pop %v251
        %v253 = vadd.f32 %v252, 1.0
        %v254 = vrcp.pop %v253
        %v255 = vmul.f32 %v253, %v254
        %v256 = vsub.f32 1.0, %v255
        %v257 = vmul.f32 %v254, %v256
        %v258 = vadd.f32 %v254, %v257
        %vm259 = vweird.f32 %v253
        %vm260 = vweird.f32 %v254
        %vm261 = vmor %vm259, %vm260
        %v262 = vsel %vm261, %v254, %v258
        %v263 = vand.u32 2147483647, %v253
        %vm264 = vcmp.eq.f32.partialorder %v263, 8.507059e+37
        %v265 = vand.u32 %v253, 2147483648
        %v266 = vor.u32 1.1754944e-38, %v265
        %v267 = vsel %vm264, %v266, %v262
        %v268 = vmul.f32 1.0, %v267
        %v271 = vunpack.c.l.s4 839922192
        %v272 = vunpack.c.0.s8 %v271
        %v273 = vperm.slane %v268, %v272
        %v275 = vmul.f32 %v189, %v273
        %276 = vst [vmem:[%s188] sm:$0xff] %v275
        %s277 = sand.u32 %s96, 1
        %s278 = scalar_lea.sflag [#allocation4], %s277
        %s279 = sand.u32 %s96, 1
        %s280 = smul.addr %s279, 8
        %s281 = scalar_lea.vmem [#allocation5], %s280
        // Predicated region
        $region37: #{tpu_custom_call.1} parent=31 // pred_check
          %p282 = pneg %p106
        $region38: #{tpu_custom_call.1} parent=31 // pred_check_branch
          %284 = sbr.rel (%p282) target = $region40
        $region39: #{tpu_custom_call.1} parent=31 // pred_region
          %286 = vsyncadd %s278, 0
          %s287 = smul.addr %s20, 2
          %s288 = smul.addr %s287, 4
          %s289 = scalar_lea.hbm %s3, %s288
          %s291 = sshll.u32 %s281, 4
          %s292 = int_to_ptr.vmem [resolvable:$true] %s291
          %s293 = sshll.u32 %s289, 4
          %s294 = int_to_ptr.hbm [resolvable:$true] %s293
          %296 = dma.vmem_to_hbm [thread:$0]  %s292, 128, %s294, %s278
        $region40: #{tpu_custom_call.1} parent=31 // pred_fallthru
          _
      $region32: #{tpu_custom_call.1} parent=5 // pred_fallthru
        _
      %p297 = scmp.le.s32.totalorder 2, %s15
      // Predicated region
      $region41: #{tpu_custom_call.1} parent=5 // pred_check
        %p298 = pneg %p297
      $region42: #{tpu_custom_call.1} parent=5 // pred_check_branch
        %300 = sbr.rel (%p298) target = $region44
      $region43: #{tpu_custom_call.1} parent=5 // pred_region
        %s301 = ssub.s32 %s15, 2
        // Predicated region
        $region45: #{tpu_custom_call.1} parent=43 // pred_check
          %p302 = pneg %p112
        $region46: #{tpu_custom_call.1} parent=43 // pred_check_branch
          %304 = sbr.rel (%p302) target = $region48
        $region47: #{tpu_custom_call.1} parent=43 // pred_region
          %s305 = sand.u32 %s97, 1
          %s306 = scalar_lea.sflag [#allocation4], %s305
          %s307 = sand.u32 %s97, 1
          %s308 = smul.addr %s307, 8
          %s309 = scalar_lea.vmem [#allocation5], %s308
          %311 = dma.done %s306, 128
        $region48: #{tpu_custom_call.1} parent=43 // pred_fallthru
          _
      $region44: #{tpu_custom_call.1} parent=5 // pred_fallthru
        _
    $region6: #{tpu_custom_call.1} parent=1 // loop_footer
      %s19 = sadd.s32 1, %s15
    $region7: #{tpu_custom_call.1} parent=1 // loop_footer_branch
      %14 = sbr.rel target = $region3
    $region8: #{tpu_custom_call.1} parent=1 // loop_exit
      _
    %312 = vsyncpa [#allocation3], 1
    %s313 = scalar_lea.sflag [#allocation3], 1
    %314 = vsyncpa %s313, 1
    %315 = vsyncpa [#allocation4], 1
    %s316 = scalar_lea.sflag [#allocation4], 1
    %317 = vsyncpa %s316, 1

</llo_original>
